<compile_context>
chip_gen: v5e
topology: v5e:2x2
jax: 0.10.0
libtpu: 0.0.40
codegen_flags: <defaults>
</compile_context>

<pallas_src>
import functools

import jax
import jax.numpy as jnp
from jax.experimental import pallas as pl
from jax.experimental.pallas import tpu as pltpu


def _diff_weight_kernel(zg_ref, x_ref, ft_ref, al_ref, o_ref, *,
                        concrete_lower, concrete_upper, structured):
    l = concrete_lower
    r = concrete_upper

    x = x_ref[...].astype(jnp.float32)
    ft = ft_ref[...].astype(jnp.float32)
    alpha = al_ref[...].astype(jnp.float32)

    # concrete_stretched, deterministic (u_term = 0): EUP sigmoid + VPU clip.
    z = jnp.clip(jax.nn.sigmoid(alpha) * (r - l) + l, 0.0, 1.0)
    if structured:
        # Group gate precomputed as one scalar in the wrapper (SMEM prefetch).
        z = z * zg_ref[0]

    # finetune - (finetune - X).detach() + z*(finetune - X) == X + z*(finetune - X)
    o_ref[...] = (x + z * (ft - x)).astype(o_ref.dtype)


def _hw_params():
    """Generation-dependent budgets (per-step VMEM, scoped limit, min blocks)."""
    kind = ""
    try:
        kind = jax.devices()[0].device_kind.lower()
    except Exception:  # pragma: no cover - no devices / CPU fallback
        pass
    if "v7" in kind:
        # 64 MiB VMEM/TC, 2 TCs, 3.2 TB/s HBM: modest blocks, capped limit,
        # and >=4 grid blocks so both TensorCores stream data.
        return dict(step_bytes=10 << 20, vmem_cap=48 << 20, min_blocks=4)
    if "v6" in kind:
        # 128 MiB VMEM, 1 TC: large blocks amortize the ~0.35us per-step cost.
        return dict(step_bytes=24 << 20, vmem_cap=96 << 20, min_blocks=1)
    if "v5 lite" in kind or "v5lite" in kind or "v5e" in kind:
        # ~0.8 TB/s HBM: 8 MiB/step already dwarfs fixed overhead; the explicit
        # limit matters because the default scoped VMEM is only 16 MiB.
        return dict(step_bytes=8 << 20, vmem_cap=64 << 20, min_blocks=1)
    # Unknown generation: conservative numbers that fit every chip (incl. v7x).
    return dict(step_bytes=8 << 20, vmem_cap=48 << 20, min_blocks=4)


def _lane_dense_view(M, N):
    """Row-major (rows, 128*k) reshape for narrow / ragged last dims, if any."""
    if N % 128 == 0:
        return None
    total = M * N
    for lanes in (1024, 512, 256, 128):
        if total % lanes == 0:
            return (total // lanes, lanes)
    return None


def _choose_tiles(M, N, sub, bpe, step_bytes, row_cap, min_blocks):
    """Pick a (tm, tn) block: lane-dense, sublane-aligned, ~step_bytes total.

    `bpe` is the summed per-element byte size of all four tensors (3 in + out),
    so `tm*tn*bpe` is the true single-buffer VMEM footprint of one grid step.
    """
    # Lane tile: keep full rows (one contiguous HBM DMA per step) unless even
    # `sub` rows at full N exceed the row cap; only then lane-split.
    if N * bpe * sub <= row_cap or N <= 128:
        tn = N
    else:
        tn = max(128, (step_bytes // (sub * bpe)) // 128 * 128)
        tn = min(tn, N)
    # Row tile: fill the per-step budget, rounded down to the sublane multiple.
    tm = max(sub, (step_bytes // (tn * bpe)) // sub * sub)
    if tm >= M:
        tm = M                      # full dim is always layout-legal

    gm, gn = pl.cdiv(M, tm), pl.cdiv(N, tn)
    # Guarantee enough grid blocks for every TensorCore (v7x megacore): halve
    # the row tile (keeping full lane-dense rows) until the grid is big enough.
    while gm * gn < min_blocks:
        if tm > sub:
            new_tm = max(sub, ((tm // 2) // sub) * sub)
            if new_tm == tm:
                break
            tm = new_tm
        elif tn > 128:
            new_tn = max(128, ((tn // 2) // 128) * 128)
            if new_tn == tn:
                break
            tn = new_tn
        else:
            break
        gm, gn = pl.cdiv(M, tm), pl.cdiv(N, tn)
    return int(tm), int(tn)


def diff_weight_finetune_forward(x, finetune, alpha, alpha_group=None, *,
                                 concrete_lower=-1.5, concrete_upper=1.5,
                                 structured=True, step_bytes=None,
                                 buffer_count=None):
    """DiffWeightFinetune forward over a (out_features, in_features) weight."""
    assert x.shape == finetune.shape == alpha.shape
    assert x.ndim == 2, "expects a 2D (out_features, in_features) weight"
    orig_shape = x.shape
    M, N = x.shape
    l = float(concrete_lower)
    r = float(concrete_upper)

    hw = _hw_params()
    if step_bytes is None:
        step_bytes = hw["step_bytes"]
    row_cap = max(step_bytes, 16 << 20)

    # Lane-dense re-view for narrow / ragged last dims (elementwise op, so a
    # row-major reshape is free plumbing and avoids masked partial stores).
    view = _lane_dense_view(M, N)
    if view is not None:
        x = jnp.reshape(x, view)
        finetune = jnp.reshape(finetune, view)
        alpha = jnp.reshape(alpha, view)
        M, N = view

    itemsizes = [jnp.dtype(t.dtype).itemsize for t in (x, finetune, alpha)]
    out_itemsize = jnp.dtype(x.dtype).itemsize
    bpe = sum(itemsizes) + out_itemsize           # true bytes/elem per step
    sub = max(8, 32 // min(itemsizes + [out_itemsize]))   # f32:8 bf16:16 i8:32

    tm, tn = _choose_tiles(M, N, sub, bpe, step_bytes, row_cap,
                           hw["min_blocks"])
    gm, gn = pl.cdiv(M, tm), pl.cdiv(N, tn)

    # Group gate: one scalar, computed once here instead of per grid step.
    if structured:
        if alpha_group is None:
            raise ValueError("structured=True requires alpha_group")
        ag = jnp.asarray(alpha_group, jnp.float32).reshape(-1)
        if ag.shape[0] != 1:
            raise ValueError("alpha_group must be a single scalar gate "
                             "(module registers it with shape (1,))")
        zg = jnp.clip(jax.nn.sigmoid(ag) * (r - l) + l, 0.0, 1.0)
    else:
        zg = jnp.ones((1,), jnp.float32)

    kernel = functools.partial(
        _diff_weight_kernel,
        concrete_lower=l, concrete_upper=r, structured=structured)

    blk = lambda i, j, zg_ref: (i, j)   # scalar-prefetch ref trails grid indices

    # VMEM: `buffers` copies of every (tm, tn) block (all dtypes) + headroom,
    # clamped to a generation-safe scoped limit.
    buffers = int(buffer_count) if buffer_count else 2
    step_actual = tm * tn * bpe
    vmem_limit = int(min(max(buffers * step_actual + (8 << 20), 32 << 20),
                         hw["vmem_cap"]))

    def in_spec():
        if buffers > 2:
            # Deeper input buffering (e.g. v5e DMA-issue gaps); off by default.
            return pl.BlockSpec((tm, tn), blk, pipeline_mode=pl.Buffered(buffers))
        return pl.BlockSpec((tm, tn), blk)

    out = pl.pallas_call(
        kernel,
        out_shape=jax.ShapeDtypeStruct((M, N), x.dtype),
        grid_spec=pltpu.PrefetchScalarGridSpec(
            num_scalar_prefetch=1,            # z_group scalar lands in SMEM
            grid=(gm, gn),
            in_specs=[
                in_spec(),                    # X
                in_spec(),                    # finetune
                in_spec(),                    # alpha
            ],
            out_specs=pl.BlockSpec((tm, tn), blk),
        ),
        compiler_params=pltpu.CompilerParams(
            dimension_semantics=("parallel", "parallel"),
            vmem_limit_bytes=vmem_limit),
    )(zg, x, finetune, alpha)

    if view is not None:
        out = jnp.reshape(out, orig_shape)
    return out


def _reference(x, finetune, alpha, alpha_group, l, r, structured):
    x32 = x.astype(jnp.float32)
    ft32 = finetune.astype(jnp.float32)
    a32 = alpha.astype(jnp.float32)
    z = jnp.clip(jax.nn.sigmoid(a32) * (r - l) + l, 0.0, 1.0)
    if structured:
        z = z * jnp.clip(
            jax.nn.sigmoid(alpha_group.astype(jnp.float32)[0]) * (r - l) + l,
            0.0, 1.0)
    return (x32 + z * (ft32 - x32)).astype(x.dtype)


if __name__ == "__main__":
    key = jax.random.PRNGKey(0)
    k_w, k_p, k_a = jax.random.split(key, 3)

    # Small Linear-style weight (out_features, in_features).
    M, N = 256, 512
    concrete_lower, concrete_upper = -1.5, 1.5

    x = jax.random.normal(k_w, (M, N), dtype=jnp.float32)            # wrapped weight X
    finetune = x + 0.1 * jax.random.normal(k_p, (M, N), jnp.float32)
    # Spread alpha so z covers clipped and unclipped regimes.
    alpha = 2.0 * jax.random.normal(k_a, (M, N), jnp.float32)
    alpha_group = jnp.full((1,), 1.0, dtype=jnp.float32)

    ref_s = _reference(x, finetune, alpha, alpha_group,
                       concrete_lower, concrete_upper, True)
    ref_u = _reference(x, finetune, alpha, alpha_group,
                       concrete_lower, concrete_upper, False)

    # 1) Default (generation-aware) tiling, structured path.
    out = diff_weight_finetune_forward(
        x, finetune, alpha, alpha_group,
        concrete_lower=concrete_lower, concrete_upper=concrete_upper,
        structured=True)
    out = jax.block_until_ready(out)
    assert out.shape == x.shape and out.dtype == x.dtype
    assert jnp.allclose(out, ref_s, atol=1e-5, rtol=1e-5)

    # 2) Forced-small step budget: exercises the multi-block (cdiv) grid path.
    out_tiled = diff_weight_finetune_forward(
        x, finetune, alpha, alpha_group,
        concrete_lower=concrete_lower, concrete_upper=concrete_upper,
        structured=True, step_bytes=256 << 10)
    out_tiled = jax.block_until_ready(out_tiled)
    assert jnp.allclose(out_tiled, ref_s, atol=1e-5, rtol=1e-5)

    # 3) Unstructured (no alpha_group) path.
    out_unstr = diff_weight_finetune_forward(
        x, finetune, alpha, None,
        concrete_lower=concrete_lower, concrete_upper=concrete_upper,
        structured=False)
    out_unstr = jax.block_until_ready(out_unstr)
    assert jnp.allclose(out_unstr, ref_u, atol=1e-5, rtol=1e-5)

    # 4) Narrow / ragged last dim: triggers the lane-dense row-major re-view.
    Mn, Nn = 64, 96
    xn = jax.random.normal(k_w, (Mn, Nn), jnp.float32)
    ftn = xn + 0.1 * jax.random.normal(k_p, (Mn, Nn), jnp.float32)
    aln = 2.0 * jax.random.normal(k_a, (Mn, Nn), jnp.float32)
    ref_n = _reference(xn, ftn, aln, alpha_group,
                       concrete_lower, concrete_upper, True)
    out_n = diff_weight_finetune_forward(
        xn, ftn, aln, alpha_group,
        concrete_lower=concrete_lower, concrete_upper=concrete_upper,
        structured=True)
    out_n = jax.block_until_ready(out_n)
    assert out_n.shape == (Mn, Nn)
    assert jnp.allclose(out_n, ref_n, atol=1e-5, rtol=1e-5)

    # 5) Mixed dtypes (bf16 weights, f32 alpha): exercises the summed-itemsize
    #    VMEM accounting and the bf16 (16-row sublane) tile alignment.
    Mb, Nb = 128, 384
    xb = jax.random.normal(k_w, (Mb, Nb), jnp.float32).astype(jnp.bfloat16)
    ftb = (xb.astype(jnp.float32)
           + 0.1 * jax.random.normal(k_p, (Mb, Nb), jnp.float32)).astype(jnp.bfloat16)
    alb = 2.0 * jax.random.normal(k_a, (Mb, Nb), jnp.float32)
    ref_b = _reference(xb, ftb, alb, alpha_group,
                       concrete_lower, concrete_upper, True)
    out_b = diff_weight_finetune_forward(
        xb, ftb, alb, alpha_group,
        concrete_lower=concrete_lower, concrete_upper=concrete_upper,
        structured=True)
    out_b = jax.block_until_ready(out_b)
    assert out_b.dtype == jnp.bfloat16
    assert jnp.allclose(out_b.astype(jnp.float32), ref_b.astype(jnp.float32),
                        atol=2e-2, rtol=2e-2)

    print("KERNEL_OK")
</pallas_src>

<mosaic_0001>
module attributes {stable_mosaic.version = 11 : i64} {
  func.func @_diff_weight_kernel(%arg0: i32, %arg1: i32, %arg2: memref<1xf32, #tpu.memory_space<smem>>, %arg3: memref<64x512xf32, #tpu.memory_space<vmem>>, %arg4: memref<64x512xf32, #tpu.memory_space<vmem>>, %arg5: memref<64x512xf32, #tpu.memory_space<vmem>>, %arg6: memref<64x512xf32, #tpu.memory_space<vmem>>) attributes {dimension_semantics = [#tpu.dimension_semantics<parallel>, #tpu.dimension_semantics<parallel>], iteration_bounds = array<i64: 4, 1>, scalar_prefetch = 1 : i64, scratch_operands = 0 : i64, tpu.core_type = #tpu.core_type<tc>, window_params = [{transform_indices = @transform_0, window_bounds = array<i64: 64, 512>}, {transform_indices = @transform_1, window_bounds = array<i64: 64, 512>}, {transform_indices = @transform_2, window_bounds = array<i64: 64, 512>}, {transform_indices = @transform_3, window_bounds = array<i64: 64, 512>}]} {
    %c0 = arith.constant 0 : index
    %c0_0 = arith.constant 0 : index
    %0 = vector.load %arg3[%c0, %c0_0] : memref<64x512xf32, #tpu.memory_space<vmem>>, vector<64x512xf32>
    %c0_1 = arith.constant 0 : index
    %c0_2 = arith.constant 0 : index
    %1 = vector.load %arg4[%c0_1, %c0_2] : memref<64x512xf32, #tpu.memory_space<vmem>>, vector<64x512xf32>
    %c0_3 = arith.constant 0 : index
    %c0_4 = arith.constant 0 : index
    %2 = vector.load %arg5[%c0_3, %c0_4] : memref<64x512xf32, #tpu.memory_space<vmem>>, vector<64x512xf32>
    %3 = arith.negf %2 : vector<64x512xf32>
    %4 = math.exp %3 : vector<64x512xf32>
    %cst = arith.constant 1.000000e+00 : f32
    %5 = vector.broadcast %cst : f32 to vector<64x512xf32>
    %6 = arith.addf %5, %4 : vector<64x512xf32>
    %7 = arith.divf %5, %6 : vector<64x512xf32>
    %cst_5 = arith.constant 3.000000e+00 : f32
    %8 = vector.broadcast %cst_5 : f32 to vector<64x512xf32>
    %9 = arith.mulf %7, %8 : vector<64x512xf32>
    %cst_6 = arith.constant -1.500000e+00 : f32
    %10 = vector.broadcast %cst_6 : f32 to vector<64x512xf32>
    %11 = arith.addf %9, %10 : vector<64x512xf32>
    %cst_7 = arith.constant 0.000000e+00 : f32
    %cst_8 = arith.constant 1.000000e+00 : f32
    %12 = vector.broadcast %cst_7 : f32 to vector<64x512xf32>
    %13 = arith.maximumf %12, %11 : vector<64x512xf32>
    %14 = vector.broadcast %cst_8 : f32 to vector<64x512xf32>
    %15 = arith.minimumf %14, %13 : vector<64x512xf32>
    %c0_9 = arith.constant 0 : index
    %16 = memref.load %arg2[%c0_9] : memref<1xf32, #tpu.memory_space<smem>>
    %17 = vector.broadcast %16 : f32 to vector<64x512xf32>
    %18 = arith.mulf %15, %17 : vector<64x512xf32>
    %19 = arith.subf %1, %0 : vector<64x512xf32>
    %20 = arith.mulf %18, %19 : vector<64x512xf32>
    %21 = arith.addf %0, %20 : vector<64x512xf32>
    %c0_10 = arith.constant 0 : index
    %c0_11 = arith.constant 0 : index
    %22 = vector.load %arg6[%c0_10, %c0_11] : memref<64x512xf32, #tpu.memory_space<vmem>>, vector<64x512xf32>
    tpu.vector_store %arg6[%c0_10, %c0_11], %21 {strides = array<i32>} : memref<64x512xf32, #tpu.memory_space<vmem>>, vector<64x512xf32>,
    return
  }
  func.func @transform_0(%arg0: i32, %arg1: i32, %arg2: memref<1xf32, #tpu.memory_space<smem>>) -> (i32, i32) {
    %c0_i32 = arith.constant 0 : i32
    return %arg0, %arg1 : i32, i32
  }
  func.func @transform_1(%arg0: i32, %arg1: i32, %arg2: memref<1xf32, #tpu.memory_space<smem>>) -> (i32, i32) {
    %c0_i32 = arith.constant 0 : i32
    return %arg0, %arg1 : i32, i32
  }
  func.func @transform_2(%arg0: i32, %arg1: i32, %arg2: memref<1xf32, #tpu.memory_space<smem>>) -> (i32, i32) {
    %c0_i32 = arith.constant 0 : i32
    return %arg0, %arg1 : i32, i32
  }
  func.func @transform_3(%arg0: i32, %arg1: i32, %arg2: memref<1xf32, #tpu.memory_space<smem>>) -> (i32, i32) {
    %c0_i32 = arith.constant 0 : i32
    return %arg0, %arg1 : i32, i32
  }
}

</mosaic_0001>

<llo_original>
// kernel: tpu_custom_call.1
$region0: #{tpu_custom_call.1}
  #allocation0 [shape = 'u32[]', space=smem, size = 0x4, offset = 0x4, fixed_abs, tag = 'smem constant byte address 0x4 - core index']
  #allocation1 [shape = 'u32[72,128]{1,0:T(1,128)}', space=vmem, size = 0x9000, scoped, tag = 'internal scratch']
  #allocation2 [shape = 's32[1]{0}', space=sflag, size = 0x4, scoped, tag = 'scoped memory for tpu_custom_call.1']
  #allocation3 [shape = 'f32[1]{0:T(128)S(6)}', space=smem, size = 0x200, scoped, tag = 'prefetched SMEM operand 0']
  %s0 = inlined_call_operand.<no memory space> [shape: f32[1], index: 0, kind: input, shape index: {}]
  %s1 = inlined_call_operand.hbm [shape: f32[256,512], index: 1, kind: input, shape index: {}]
  %s2 = inlined_call_operand.hbm [shape: f32[256,512], index: 2, kind: input, shape index: {}]
  %s3 = inlined_call_operand.hbm [shape: f32[256,512], index: 3, kind: input, shape index: {}]
  %s4 = inlined_call_operand.hbm [shape: f32[256,512], index: 4, kind: output, shape index: {}]
  %s5 = sld [smem:[#allocation0]]
  $region57: #{tpu_custom_call.1} parent=0
    _
  %s7 = ssub.s32 1, %s5
  %s8 = scalar_select 0, %s7, %s5
  %9 = sst [smem:[#allocation3]] %s0
  $region1: #{tpu_custom_call.1} parent=0
    #allocation4 [shape = 'u8[262144]{0}', space=vmem, size = 0x40000, scoped, tag = 'input window, operand 1']
    #allocation5 [shape = 's32[2]{0}', space=sflag, size = 0x8, scoped, tag = 'scoped memory for tpu_custom_call.1']
    #allocation6 [shape = 's32[2]{0}', space=sflag, size = 0x8, scoped, tag = 'scoped memory for tpu_custom_call.1']
    #allocation7 [shape = 'u8[262144]{0}', space=vmem, size = 0x40000, scoped, tag = 'input window, operand 2']
    #allocation8 [shape = 's32[2]{0}', space=sflag, size = 0x8, scoped, tag = 'scoped memory for tpu_custom_call.1']
    #allocation9 [shape = 'u8[262144]{0}', space=vmem, size = 0x40000, scoped, tag = 'input window, operand 3']
    #allocation10 [shape = 'u8[262144]{0}', space=vmem, size = 0x40000, scoped, tag = 'output window, operand 0']
    %10 = vsyncpa [#allocation5], 0
    %s11 = scalar_lea.sflag [#allocation5], 1
    %12 = vsyncpa %s11, 0
    %13 = vsyncpa [#allocation8], 0
    %s14 = scalar_lea.sflag [#allocation8], 1
    %15 = vsyncpa %s14, 0
    %16 = vsyncpa [#allocation6], 0
    %s17 = scalar_lea.sflag [#allocation6], 1
    %18 = vsyncpa %s17, 0
    loop: start=0, step=1, limit=6
    $region2: #{tpu_custom_call.1} parent=1 // loop_pre_header
      _
    $region3: #{tpu_custom_call.1} parent=1 // loop_header
      %s20 = sphi 0, %s24
      %p21 = scmp.ge.s32.totalorder %s20, 6
      %s27 = sphi 0, %s39
      %s28 = sphi 0, %s35
      %s29 = sphi 0, %s27
      %s30 = sphi 0, %s28
      %s31 = sphi 0, %s29
      %s32 = sphi 0, %s30
      %s44 = sphi 0, %s46
      %s47 = sphi 0, %s44
      %s48 = sphi 0, %s47
      %s64 = sphi 0, %s48
      %s72 = sphi 0, %s74
      %s75 = sphi 0, %s72
      %s76 = sphi 0, %s75
      %s92 = sphi 0, %s76
      %s100 = sphi 0, %s102
      %s103 = sphi 0, %s100
      %s104 = sphi 0, %s103
      %s120 = sphi 0, %s104
      %s128 = sphi 0, %s130
      %s131 = sphi 0, %s128
      %s132 = sphi 0, %s131
      %s148 = sphi 0, %s132
    $region4: #{tpu_custom_call.1} parent=1 // loop_header_branch
      %23 = sbr.rel (%p21) target = $region8
    $region5: #{tpu_custom_call.1} parent=1 // loop_body
      %s25 = ssub.s32 %s20, 1
      %s26 = ssub.s32 %s20, 2
      %s33 = sadd.s32 1, %s28
      %p34 = scmp.ge.s32.totalorder %s33, 1
      %s35 = scalar_select %p34, 0, %s33
      %s36 = sadd.s32 1, %s27
      %s37 = scalar_select %p34, %s36, %s27
      %p38 = scmp.ge.s32.totalorder %s37, 4
      %s39 = scalar_select %p38, 0, %s37
      %s40 = ssub.s32 %s27, %s39
      %s41 = ssub.s32 %s28, %s35
      %s42 = sor.u32 %s40, %s41
      %p43 = scmp.eq.s32.totalorder %s42, 0
      %s45 = sadd.s32 %s44, 1
      %s46 = scalar_select %p43, %s44, %s45
      %p49 = pneg %p43
      %p50 = scmp.eq.s32.totalorder %s20, 3
      %p51 = por %p49, %p50
      %p52 = scmp.ne.s32.totalorder %s44, %s47
      %p53 = scmp.eq.s32.totalorder %s20, 0
      %p54 = por %p52, %p53
      %p55 = scmp.ne.s32.totalorder %s44, %s47
      %p56 = scmp.eq.s32.totalorder %s25, 3
      %p57 = por %p55, %p56
      %p58 = scmp.ne.s32.totalorder %s47, %s48
      %p59 = scmp.eq.s32.totalorder %s25, 0
      %p60 = por %p58, %p59
      %p61 = scmp.ne.s32.totalorder %s47, %s48
      %p62 = scmp.eq.s32.totalorder %s26, 3
      %p63 = por %p61, %p62
      %p65 = scmp.ne.s32.totalorder %s48, %s64
      %p66 = scmp.eq.s32.totalorder %s26, 0
      %p67 = por %p65, %p66
      %s68 = ssub.s32 %s27, %s39
      %s69 = ssub.s32 %s28, %s35
      %s70 = sor.u32 %s68, %s69
      %p71 = scmp.eq.s32.totalorder %s70, 0
      %s73 = sadd.s32 %s72, 1
      %s74 = scalar_select %p71, %s72, %s73
      %p77 = pneg %p71
      %p78 = scmp.eq.s32.totalorder %s20, 3
      %p79 = por %p77, %p78
      %p80 = scmp.ne.s32.totalorder %s72, %s75
      %p81 = scmp.eq.s32.totalorder %s20, 0
      %p82 = por %p80, %p81
      %p83 = scmp.ne.s32.totalorder %s72, %s75
      %p84 = scmp.eq.s32.totalorder %s25, 3
      %p85 = por %p83, %p84
      %p86 = scmp.ne.s32.totalorder %s75, %s76
      %p87 = scmp.eq.s32.totalorder %s25, 0
      %p88 = por %p86, %p87
      %p89 = scmp.ne.s32.totalorder %s75, %s76
      %p90 = scmp.eq.s32.totalorder %s26, 3
      %p91 = por %p89, %p90
      %p93 = scmp.ne.s32.totalorder %s76, %s92
      %p94 = scmp.eq.s32.totalorder %s26, 0
      %p95 = por %p93, %p94
      %s96 = ssub.s32 %s27, %s39
      %s97 = ssub.s32 %s28, %s35
      %s98 = sor.u32 %s96, %s97
      %p99 = scmp.eq.s32.totalorder %s98, 0
      %s101 = sadd.s32 %s100, 1
      %s102 = scalar_select %p99, %s100, %s101
      %p105 = pneg %p99
      %p106 = scmp.eq.s32.totalorder %s20, 3
      %p107 = por %p105, %p106
      %p108 = scmp.ne.s32.totalorder %s100, %s103
      %p109 = scmp.eq.s32.totalorder %s20, 0
      %p110 = por %p108, %p109
      %p111 = scmp.ne.s32.totalorder %s100, %s103
      %p112 = scmp.eq.s32.totalorder %s25, 3
      %p113 = por %p111, %p112
      %p114 = scmp.ne.s32.totalorder %s103, %s104
      %p115 = scmp.eq.s32.totalorder %s25, 0
      %p116 = por %p114, %p115
      %p117 = scmp.ne.s32.totalorder %s103, %s104
      %p118 = scmp.eq.s32.totalorder %s26, 3
      %p119 = por %p117, %p118
      %p121 = scmp.ne.s32.totalorder %s104, %s120
      %p122 = scmp.eq.s32.totalorder %s26, 0
      %p123 = por %p121, %p122
      %s124 = ssub.s32 %s27, %s39
      %s125 = ssub.s32 %s28, %s35
      %s126 = sor.u32 %s124, %s125
      %p127 = scmp.eq.s32.totalorder %s126, 0
      %s129 = sadd.s32 %s128, 1
      %s130 = scalar_select %p127, %s128, %s129
      %p133 = pneg %p127
      %p134 = scmp.eq.s32.totalorder %s20, 3
      %p135 = por %p133, %p134
      %p136 = scmp.ne.s32.totalorder %s128, %s131
      %p137 = scmp.eq.s32.totalorder %s20, 0
      %p138 = por %p136, %p137
      %p139 = scmp.ne.s32.totalorder %s128, %s131
      %p140 = scmp.eq.s32.totalorder %s25, 3
      %p141 = por %p139, %p140
      %p142 = scmp.ne.s32.totalorder %s131, %s132
      %p143 = scmp.eq.s32.totalorder %s25, 0
      %p144 = por %p142, %p143
      %p145 = scmp.ne.s32.totalorder %s131, %s132
      %p146 = scmp.eq.s32.totalorder %s26, 3
      %p147 = por %p145, %p146
      %p149 = scmp.ne.s32.totalorder %s132, %s148
      %p150 = scmp.eq.s32.totalorder %s26, 0
      %p151 = por %p149, %p150
      %p152 = scmp.le.s32.totalorder 1, %s20
      %p153 = scmp.lt.s32.totalorder %s20, 5
      %p154 = pnand %p152, %p153
      %p155 = pneg %p154
      // Predicated region
      $region9: #{tpu_custom_call.1} parent=5 // pred_check
        _
      $region10: #{tpu_custom_call.1} parent=5 // pred_check_branch
        %157 = sbr.rel (%p154) target = $region12
      $region11: #{tpu_custom_call.1} parent=5 // pred_region
        %s158 = ssub.s32 %s20, 1
      $region12: #{tpu_custom_call.1} parent=5 // pred_fallthru
        _
      %p159 = scmp.lt.s32.totalorder %s20, 4
      // Predicated region
      $region13: #{tpu_custom_call.1} parent=5 // pred_check
        %p160 = pneg %p159
      $region14: #{tpu_custom_call.1} parent=5 // pred_check_branch
        %162 = sbr.rel (%p160) target = $region16
      $region15: #{tpu_custom_call.1} parent=5 // pred_region
        // Predicated region
        $region17: #{tpu_custom_call.1} parent=15 // pred_check
          %p163 = pneg %p54
        $region18: #{tpu_custom_call.1} parent=15 // pred_check_branch
          %165 = sbr.rel (%p163) target = $region20
        $region19: #{tpu_custom_call.1} parent=15 // pred_region
          %s166 = sand.u32 %s44, 1
          %s167 = scalar_lea.sflag [#allocation5], %s166
          %s168 = sand.u32 %s44, 1
          %s169 = smul.addr %s168, 256
          %s170 = scalar_lea.vmem [#allocation4], %s169
          %s171 = smul.u32 8, %s27
          %s172 = smul.u32 4, %s28
          %174 = vsyncadd %s167, 0
          %s175 = smul.addr %s171, 4
          %s176 = sadd.s32 %s172, %s175
          %s177 = smul.addr %s176, 8
          %s178 = scalar_lea.hbm %s1, %s177
          %s179 = sshll.u32 %s178, 4
          %s180 = int_to_ptr.hbm [resolvable:$true] %s179
          %s181 = sshll.u32 %s170, 4
          %s182 = int_to_ptr.vmem [resolvable:$true] %s181
          %187 = dma.hbm_to_vmem [thread:$0]  %s180, 4096, %s182, %s167, 512, 512, 32
        $region20: #{tpu_custom_call.1} parent=15 // pred_fallthru
          _
        // Predicated region
        $region21: #{tpu_custom_call.1} parent=15 // pred_check
          %p188 = pneg %p82
        $region22: #{tpu_custom_call.1} parent=15 // pred_check_branch
          %190 = sbr.rel (%p188) target = $region24
        $region23: #{tpu_custom_call.1} parent=15 // pred_region
          %s191 = sand.u32 %s20, 1
          %s192 = scalar_lea.sflag [#allocation8], %s191
          %s193 = sand.u32 %s72, 1
          %s194 = smul.addr %s193, 256
          %s195 = scalar_lea.vmem [#allocation7], %s194
          %s196 = smul.u32 8, %s27
          %s197 = smul.u32 4, %s28
          %199 = vsyncadd %s192, 0
          %s200 = smul.addr %s196, 4
          %s201 = sadd.s32 %s197, %s200
          %s202 = smul.addr %s201, 8
          %s203 = scalar_lea.hbm %s2, %s202
          %s204 = sshll.u32 %s203, 4
          %s205 = int_to_ptr.hbm [resolvable:$true] %s204
          %s206 = sshll.u32 %s195, 4
          %s207 = int_to_ptr.vmem [resolvable:$true] %s206
          %212 = dma.hbm_to_vmem [thread:$0]  %s205, 4096, %s207, %s192, 512, 512, 32
        $region24: #{tpu_custom_call.1} parent=15 // pred_fallthru
          _
        // Predicated region
        $region25: #{tpu_custom_call.1} parent=15 // pred_check
          %p213 = pneg %p110
        $region26: #{tpu_custom_call.1} parent=15 // pred_check_branch
          %215 = sbr.rel (%p213) target = $region28
        $region27: #{tpu_custom_call.1} parent=15 // pred_region
          %s216 = sand.u32 %s20, 1
          %s217 = scalar_lea.sflag [#allocation8], %s216
          %s218 = sand.u32 %s100, 1
          %s219 = smul.addr %s218, 256
          %s220 = scalar_lea.vmem [#allocation9], %s219
          %s221 = smul.u32 8, %s27
          %s222 = smul.u32 4, %s28
          %224 = vsyncadd %s217, 0
          %s225 = smul.addr %s221, 4
          %s226 = sadd.s32 %s222, %s225
          %s227 = smul.addr %s226, 8
          %s228 = scalar_lea.hbm %s3, %s227
          %s229 = sshll.u32 %s228, 4
          %s230 = int_to_ptr.hbm [resolvable:$true] %s229
          %s231 = sshll.u32 %s220, 4
          %s232 = int_to_ptr.vmem [resolvable:$true] %s231
          %237 = dma.hbm_to_vmem [thread:$0]  %s230, 4096, %s232, %s217, 512, 512, 32
        $region28: #{tpu_custom_call.1} parent=15 // pred_fallthru
          _
      $region16: #{tpu_custom_call.1} parent=5 // pred_fallthru
        _
      %p238 = scmp.le.s32.totalorder 1, %s20
      %p239 = scmp.lt.s32.totalorder %s20, 5
      %p240 = pnand %p238, %p239
      %p241 = pneg %p240
      // Predicated region
      $region29: #{tpu_custom_call.1} parent=5 // pred_check
        _
      $region30: #{tpu_custom_call.1} parent=5 // pred_check_branch
        %243 = sbr.rel (%p240) target = $region32
      $region31: #{tpu_custom_call.1} parent=5 // pred_region
        %s244 = ssub.s32 %s20, 1
        %s245 = sand.u32 %s47, 1
        %s246 = scalar_lea.sflag [#allocation5], %s245
        %s247 = sand.u32 %s47, 1
        %s248 = smul.addr %s247, 256
        %s249 = scalar_lea.vmem [#allocation4], %s248
        // Predicated region
        $region33: #{tpu_custom_call.1} parent=31 // pred_check
          %p250 = pneg %p60
        $region34: #{tpu_custom_call.1} parent=31 // pred_check_branch
          %252 = sbr.rel (%p250) target = $region36
        $region35: #{tpu_custom_call.1} parent=31 // pred_region
          %254 = dma.done %s246, 4096
        $region36: #{tpu_custom_call.1} parent=31 // pred_fallthru
          _
        %s255 = sand.u32 %s25, 1
        %s256 = scalar_lea.sflag [#allocation8], %s255
        %s257 = sand.u32 %s75, 1
        %s258 = smul.addr %s257, 256
        %s259 = scalar_lea.vmem [#allocation7], %s258
        // Predicated region
        $region37: #{tpu_custom_call.1} parent=31 // pred_check
          %p260 = pneg %p88
        $region38: #{tpu_custom_call.1} parent=31 // pred_check_branch
          %262 = sbr.rel (%p260) target = $region40
        $region39: #{tpu_custom_call.1} parent=31 // pred_region
          %264 = dma.done %s256, 4096
        $region40: #{tpu_custom_call.1} parent=31 // pred_fallthru
          _
        %s265 = sand.u32 %s25, 1
        %s266 = scalar_lea.sflag [#allocation8], %s265
        %s267 = sand.u32 %s103, 1
        %s268 = smul.addr %s267, 256
        %s269 = scalar_lea.vmem [#allocation9], %s268
        // Predicated region
        $region41: #{tpu_custom_call.1} parent=31 // pred_check
          %p270 = pneg %p116
        $region42: #{tpu_custom_call.1} parent=31 // pred_check_branch
          %272 = sbr.rel (%p270) target = $region44
        $region43: #{tpu_custom_call.1} parent=31 // pred_region
          %274 = dma.done %s266, 4096
        $region44: #{tpu_custom_call.1} parent=31 // pred_fallthru
          _
        %s275 = sand.u32 %s47, 1
        %s276 = scalar_lea.sflag [#allocation5], %s275
        %s277 = sand.u32 %s47, 1
        %s278 = smul.addr %s277, 256
        %s279 = scalar_lea.vmem [#allocation4], %s278
        %p280 = pneg %p60
        %p281 = pneg %p57
        %s282 = sand.u32 %s25, 1
        %s283 = scalar_lea.sflag [#allocation8], %s282
        %s284 = sand.u32 %s75, 1
        %s285 = smul.addr %s284, 256
        %s286 = scalar_lea.vmem [#allocation7], %s285
        %p287 = pneg %p88
        %p288 = pneg %p85
        %s289 = sand.u32 %s25, 1
        %s290 = scalar_lea.sflag [#allocation8], %s289
        %s291 = sand.u32 %s103, 1
        %s292 = smul.addr %s291, 256
        %s293 = scalar_lea.vmem [#allocation9], %s292
        %p294 = pneg %p116
        %p295 = pneg %p113
        %p296 = pneg %p144
        %p297 = pneg %p141
        %s298 = sand.u32 %s131, 1
        %s299 = scalar_lea.sflag [#allocation6], %s298
        %s300 = sand.u32 %s131, 1
        %s301 = smul.addr %s300, 256
        %s302 = scalar_lea.vmem [#allocation10], %s301
        %s303 = smul.u32 8, %s29
        %s304 = smul.u32 4, %s30
        %s305 = smul.u32 8, %s29
        %s306 = smul.u32 4, %s30
        %s307 = smul.u32 8, %s29
        %s308 = smul.u32 4, %s30
        %s309 = smul.u32 8, %s29
        %s310 = smul.u32 4, %s30
        %v311 = vld [vmem:[%s249] sm:$0xff]
        %v312 = vld [vmem:[%s249 + $0x8] sm:$0xff]
        %v313 = vld [vmem:[%s249 + $0x10] sm:$0xff]
        %v314 = vld [vmem:[%s249 + $0x18] sm:$0xff]
        %v315 = vld [vmem:[%s249 + $0x20] sm:$0xff]
        %v316 = vld [vmem:[%s249 + $0x28] sm:$0xff]
        %v317 = vld [vmem:[%s249 + $0x30] sm:$0xff]
        %v318 = vld [vmem:[%s249 + $0x38] sm:$0xff]
        %v319 = vld [vmem:[%s249 + $0x40] sm:$0xff]
        %v320 = vld [vmem:[%s249 + $0x48] sm:$0xff]
        %v321 = vld [vmem:[%s249 + $0x50] sm:$0xff]
        %v322 = vld [vmem:[%s249 + $0x58] sm:$0xff]
        %v323 = vld [vmem:[%s249 + $0x60] sm:$0xff]
        %v324 = vld [vmem:[%s249 + $0x68] sm:$0xff]
        %v325 = vld [vmem:[%s249 + $0x70] sm:$0xff]
        %v326 = vld [vmem:[%s249 + $0x78] sm:$0xff]
        %v327 = vld [vmem:[%s249 + $0x80] sm:$0xff]
        %v328 = vld [vmem:[%s249 + $0x88] sm:$0xff]
        %v329 = vld [vmem:[%s249 + $0x90] sm:$0xff]
        %v330 = vld [vmem:[%s249 + $0x98] sm:$0xff]
        %v331 = vld [vmem:[%s249 + $0xa0] sm:$0xff]
        %v332 = vld [vmem:[%s249 + $0xa8] sm:$0xff]
        %v333 = vld [vmem:[%s249 + $0xb0] sm:$0xff]
        %v334 = vld [vmem:[%s249 + $0xb8] sm:$0xff]
        %v335 = vld [vmem:[%s249 + $0xc0] sm:$0xff]
        %v336 = vld [vmem:[%s249 + $0xc8] sm:$0xff]
        %v337 = vld [vmem:[%s249 + $0xd0] sm:$0xff]
        %v338 = vld [vmem:[%s249 + $0xd8] sm:$0xff]
        %v339 = vld [vmem:[%s249 + $0xe0] sm:$0xff]
        %v340 = vld [vmem:[%s249 + $0xe8] sm:$0xff]
        %v341 = vld [vmem:[%s249 + $0xf0] sm:$0xff]
        %v342 = vld [vmem:[%s249 + $0xf8] sm:$0xff]
        %v343 = vld [vmem:[%s259] sm:$0xff]
        %v344 = vld [vmem:[%s259 + $0x8] sm:$0xff]
        %v345 = vld [vmem:[%s259 + $0x10] sm:$0xff]
        %v346 = vld [vmem:[%s259 + $0x18] sm:$0xff]
        %v347 = vld [vmem:[%s259 + $0x20] sm:$0xff]
        %v348 = vld [vmem:[%s259 + $0x28] sm:$0xff]
        %v349 = vld [vmem:[%s259 + $0x30] sm:$0xff]
        %v350 = vld [vmem:[%s259 + $0x38] sm:$0xff]
        %v351 = vld [vmem:[%s259 + $0x40] sm:$0xff]
        %v352 = vld [vmem:[%s259 + $0x48] sm:$0xff]
        %v353 = vld [vmem:[%s259 + $0x50] sm:$0xff]
        %v354 = vld [vmem:[%s259 + $0x58] sm:$0xff]
        %v355 = vld [vmem:[%s259 + $0x60] sm:$0xff]
        %v356 = vld [vmem:[%s259 + $0x68] sm:$0xff]
        %v357 = vld [vmem:[%s259 + $0x70] sm:$0xff]
        %v358 = vld [vmem:[%s259 + $0x78] sm:$0xff]
        %v359 = vld [vmem:[%s259 + $0x80] sm:$0xff]
        %v360 = vld [vmem:[%s259 + $0x88] sm:$0xff]
        %v361 = vld [vmem:[%s259 + $0x90] sm:$0xff]
        %v362 = vld [vmem:[%s259 + $0x98] sm:$0xff]
        %v363 = vld [vmem:[%s259 + $0xa0] sm:$0xff]
        %v364 = vld [vmem:[%s259 + $0xa8] sm:$0xff]
        %v365 = vld [vmem:[%s259 + $0xb0] sm:$0xff]
        %v366 = vld [vmem:[%s259 + $0xb8] sm:$0xff]
        %v367 = vld [vmem:[%s259 + $0xc0] sm:$0xff]
        %v368 = vld [vmem:[%s259 + $0xc8] sm:$0xff]
        %v369 = vld [vmem:[%s259 + $0xd0] sm:$0xff]
        %v370 = vld [vmem:[%s259 + $0xd8] sm:$0xff]
        %v371 = vld [vmem:[%s259 + $0xe0] sm:$0xff]
        %v372 = vld [vmem:[%s259 + $0xe8] sm:$0xff]
        %v373 = vld [vmem:[%s259 + $0xf0] sm:$0xff]
        %v374 = vld [vmem:[%s259 + $0xf8] sm:$0xff]
        %v375 = vld [vmem:[%s269] sm:$0xff]
        %v376 = vld [vmem:[%s269 + $0x8] sm:$0xff]
        %v377 = vld [vmem:[%s269 + $0x10] sm:$0xff]
        %v378 = vld [vmem:[%s269 + $0x18] sm:$0xff]
        %v379 = vld [vmem:[%s269 + $0x20] sm:$0xff]
        %v380 = vld [vmem:[%s269 + $0x28] sm:$0xff]
        %v381 = vld [vmem:[%s269 + $0x30] sm:$0xff]
        %v382 = vld [vmem:[%s269 + $0x38] sm:$0xff]
        %v383 = vld [vmem:[%s269 + $0x40] sm:$0xff]
        %v384 = vld [vmem:[%s269 + $0x48] sm:$0xff]
        %v385 = vld [vmem:[%s269 + $0x50] sm:$0xff]
        %v386 = vld [vmem:[%s269 + $0x58] sm:$0xff]
        %v387 = vld [vmem:[%s269 + $0x60] sm:$0xff]
        %v388 = vld [vmem:[%s269 + $0x68] sm:$0xff]
        %v389 = vld [vmem:[%s269 + $0x70] sm:$0xff]
        %v390 = vld [vmem:[%s269 + $0x78] sm:$0xff]
        %v391 = vld [vmem:[%s269 + $0x80] sm:$0xff]
        %v392 = vld [vmem:[%s269 + $0x88] sm:$0xff]
        %v393 = vld [vmem:[%s269 + $0x90] sm:$0xff]
        %v394 = vld [vmem:[%s269 + $0x98] sm:$0xff]
        %v395 = vld [vmem:[%s269 + $0xa0] sm:$0xff]
        %v396 = vld [vmem:[%s269 + $0xa8] sm:$0xff]
        %v397 = vld [vmem:[%s269 + $0xb0] sm:$0xff]
        %v398 = vld [vmem:[%s269 + $0xb8] sm:$0xff]
        %v399 = vld [vmem:[%s269 + $0xc0] sm:$0xff]
        %v400 = vld [vmem:[%s269 + $0xc8] sm:$0xff]
        %v401 = vld [vmem:[%s269 + $0xd0] sm:$0xff]
        %v402 = vld [vmem:[%s269 + $0xd8] sm:$0xff]
        %v403 = vld [vmem:[%s269 + $0xe0] sm:$0xff]
        %v404 = vld [vmem:[%s269 + $0xe8] sm:$0xff]
        %v405 = vld [vmem:[%s269 + $0xf0] sm:$0xff]
        %v406 = vld [vmem:[%s269 + $0xf8] sm:$0xff]
        %v407 = vxor.u32 %v375, 2147483648
        %v408 = vxor.u32 %v376, 2147483648
        %v409 = vxor.u32 %v377, 2147483648
        %v410 = vxor.u32 %v378, 2147483648
        %v411 = vxor.u32 %v379, 2147483648
        %v412 = vxor.u32 %v380, 2147483648
        %v413 = vxor.u32 %v381, 2147483648
        %v414 = vxor.u32 %v382, 2147483648
        %v415 = vxor.u32 %v383, 2147483648
        %v416 = vxor.u32 %v384, 2147483648
        %v417 = vxor.u32 %v385, 2147483648
        %v418 = vxor.u32 %v386, 2147483648
        %v419 = vxor.u32 %v387, 2147483648
        %v420 = vxor.u32 %v388, 2147483648
        %v421 = vxor.u32 %v389, 2147483648
        %v422 = vxor.u32 %v390, 2147483648
        %v423 = vxor.u32 %v391, 2147483648
        %v424 = vxor.u32 %v392, 2147483648
        %v425 = vxor.u32 %v393, 2147483648
        %v426 = vxor.u32 %v394, 2147483648
        %v427 = vxor.u32 %v395, 2147483648
        %v428 = vxor.u32 %v396, 2147483648
        %v429 = vxor.u32 %v397, 2147483648
        %v430 = vxor.u32 %v398, 2147483648
        %v431 = vxor.u32 %v399, 2147483648
        %v432 = vxor.u32 %v400, 2147483648
        %v433 = vxor.u32 %v401, 2147483648
        %v434 = vxor.u32 %v402, 2147483648
        %v435 = vxor.u32 %v403, 2147483648
        %v436 = vxor.u32 %v404, 2147483648
        %v437 = vxor.u32 %v405, 2147483648
        %v438 = vxor.u32 %v406, 2147483648
        %v439 = vmul.f32 %v407, 1.442695
        %v440 = vpow.pop %v439
        %v441 = vmul.f32 %v408, 1.442695
        %v442 = vpow.pop %v441
        %v443 = vmul.f32 %v409, 1.442695
        %v444 = vpow.pop %v443
        %v445 = vmul.f32 %v410, 1.442695
        %v446 = vpow.pop %v445
        %v447 = vmul.f32 %v411, 1.442695
        %v448 = vpow.pop %v447
        %v449 = vmul.f32 %v412, 1.442695
        %v450 = vpow.pop %v449
        %v451 = vmul.f32 %v413, 1.442695
        %v452 = vpow.pop %v451
        %v453 = vmul.f32 %v414, 1.442695
        %v454 = vpow.pop %v453
        %v455 = vmul.f32 %v415, 1.442695
        %v456 = vpow.pop %v455
        %v457 = vmul.f32 %v416, 1.442695
        %v458 = vpow.pop %v457
        %v459 = vmul.f32 %v417, 1.442695
        %v460 = vpow.pop %v459
        %v461 = vmul.f32 %v418, 1.442695
        %v462 = vpow.pop %v461
        %v463 = vmul.f32 %v419, 1.442695
        %v464 = vpow.pop %v463
        %v465 = vmul.f32 %v420, 1.442695
        %v466 = vpow.pop %v465
        %v467 = vmul.f32 %v421, 1.442695
        %v468 = vpow.pop %v467
        %v469 = vmul.f32 %v422, 1.442695
        %v470 = vpow.pop %v469
        %v471 = vmul.f32 %v423, 1.442695
        %v472 = vpow.pop %v471
        %v473 = vmul.f32 %v424, 1.442695
        %v474 = vpow.pop %v473
        %v475 = vmul.f32 %v425, 1.442695
        %v476 = vpow.pop %v475
        %v477 = vmul.f32 %v426, 1.442695
        %v478 = vpow.pop %v477
        %v479 = vmul.f32 %v427, 1.442695
        %v480 = vpow.pop %v479
        %v481 = vmul.f32 %v428, 1.442695
        %v482 = vpow.pop %v481
        %v483 = vmul.f32 %v429, 1.442695
        %v484 = vpow.pop %v483
        %v485 = vmul.f32 %v430, 1.442695
        %v486 = vpow.pop %v485
        %v487 = vmul.f32 %v431, 1.442695
        %v488 = vpow.pop %v487
        %v489 = vmul.f32 %v432, 1.442695
        %v490 = vpow.pop %v489
        %v491 = vmul.f32 %v433, 1.442695
        %v492 = vpow.pop %v491
        %v493 = vmul.f32 %v434, 1.442695
        %v494 = vpow.pop %v493
        %v495 = vmul.f32 %v435, 1.442695
        %v496 = vpow.pop %v495
        %v497 = vmul.f32 %v436, 1.442695
        %v498 = vpow.pop %v497
        %v499 = vmul.f32 %v437, 1.442695
        %v500 = vpow.pop %v499
        %v501 = vmul.f32 %v438, 1.442695
        %v502 = vpow.pop %v501
        %v503 = vadd.f32 %v440, 1.0
        %v504 = vadd.f32 %v442, 1.0
        %v505 = vadd.f32 %v444, 1.0
        %v506 = vadd.f32 %v446, 1.0
        %v507 = vadd.f32 %v448, 1.0
        %v508 = vadd.f32 %v450, 1.0
        %v509 = vadd.f32 %v452, 1.0
        %v510 = vadd.f32 %v454, 1.0
        %v511 = vadd.f32 %v456, 1.0
        %v512 = vadd.f32 %v458, 1.0
        %v513 = vadd.f32 %v460, 1.0
        %v514 = vadd.f32 %v462, 1.0
        %v515 = vadd.f32 %v464, 1.0
        %v516 = vadd.f32 %v466, 1.0
        %v517 = vadd.f32 %v468, 1.0
        %v518 = vadd.f32 %v470, 1.0
        %v519 = vadd.f32 %v472, 1.0
        %v520 = vadd.f32 %v474, 1.0
        %v521 = vadd.f32 %v476, 1.0
        %v522 = vadd.f32 %v478, 1.0
        %v523 = vadd.f32 %v480, 1.0
        %v524 = vadd.f32 %v482, 1.0
        %v525 = vadd.f32 %v484, 1.0
        %v526 = vadd.f32 %v486, 1.0
        %v527 = vadd.f32 %v488, 1.0
        %v528 = vadd.f32 %v490, 1.0
        %v529 = vadd.f32 %v492, 1.0
        %v530 = vadd.f32 %v494, 1.0
        %v531 = vadd.f32 %v496, 1.0
        %v532 = vadd.f32 %v498, 1.0
        %v533 = vadd.f32 %v500, 1.0
        %v534 = vadd.f32 %v502, 1.0
        %v535 = vrcp.pop %v503
        %v536 = vmul.f32 %v503, %v535
        %v537 = vsub.f32 1.0, %v536
        %v538 = vmul.f32 %v535, %v537
        %v539 = vadd.f32 %v535, %v538
        %vm540 = vweird.f32 %v503
        %vm541 = vweird.f32 %v535
        %vm542 = vmor %vm540, %vm541
        %v543 = vsel %vm542, %v535, %v539
        %v544 = vand.u32 2147483647, %v503
        %vm545 = vcmp.eq.f32.partialorder %v544, 8.507059e+37
        %v546 = vand.u32 %v503, 2147483648
        %v547 = vor.u32 1.1754944e-38, %v546
        %v548 = vsel %vm545, %v547, %v543
        %v549 = vmul.f32 1.0, %v548
        %v550 = vrcp.pop %v504
        %v551 = vmul.f32 %v504, %v550
        %v552 = vsub.f32 1.0, %v551
        %v553 = vmul.f32 %v550, %v552
        %v554 = vadd.f32 %v550, %v553
        %vm555 = vweird.f32 %v504
        %vm556 = vweird.f32 %v550
        %vm557 = vmor %vm555, %vm556
        %v558 = vsel %vm557, %v550, %v554
        %v559 = vand.u32 2147483647, %v504
        %vm560 = vcmp.eq.f32.partialorder %v559, 8.507059e+37
        %v561 = vand.u32 %v504, 2147483648
        %v562 = vor.u32 1.1754944e-38, %v561
        %v563 = vsel %vm560, %v562, %v558
        %v564 = vmul.f32 1.0, %v563
        %v565 = vrcp.pop %v505
        %v566 = vmul.f32 %v505, %v565
        %v567 = vsub.f32 1.0, %v566
        %v568 = vmul.f32 %v565, %v567
        %v569 = vadd.f32 %v565, %v568
        %vm570 = vweird.f32 %v505
        %vm571 = vweird.f32 %v565
        %vm572 = vmor %vm570, %vm571
        %v573 = vsel %vm572, %v565, %v569
        %v574 = vand.u32 2147483647, %v505
        %vm575 = vcmp.eq.f32.partialorder %v574, 8.507059e+37
        %v576 = vand.u32 %v505, 2147483648
        %v577 = vor.u32 1.1754944e-38, %v576
        %v578 = vsel %vm575, %v577, %v573
        %v579 = vmul.f32 1.0, %v578
        %v580 = vrcp.pop %v506
        %v581 = vmul.f32 %v506, %v580
        %v582 = vsub.f32 1.0, %v581
        %v583 = vmul.f32 %v580, %v582
        %v584 = vadd.f32 %v580, %v583
        %vm585 = vweird.f32 %v506
        %vm586 = vweird.f32 %v580
        %vm587 = vmor %vm585, %vm586
        %v588 = vsel %vm587, %v580, %v584
        %v589 = vand.u32 2147483647, %v506
        %vm590 = vcmp.eq.f32.partialorder %v589, 8.507059e+37
        %v591 = vand.u32 %v506, 2147483648
        %v592 = vor.u32 1.1754944e-38, %v591
        %v593 = vsel %vm590, %v592, %v588
        %v594 = vmul.f32 1.0, %v593
        %v595 = vrcp.pop %v507
        %v596 = vmul.f32 %v507, %v595
        %v597 = vsub.f32 1.0, %v596
        %v598 = vmul.f32 %v595, %v597
        %v599 = vadd.f32 %v595, %v598
        %vm600 = vweird.f32 %v507
        %vm601 = vweird.f32 %v595
        %vm602 = vmor %vm600, %vm601
        %v603 = vsel %vm602, %v595, %v599
        %v604 = vand.u32 2147483647, %v507
        %vm605 = vcmp.eq.f32.partialorder %v604, 8.507059e+37
        %v606 = vand.u32 %v507, 2147483648
        %v607 = vor.u32 1.1754944e-38, %v606
        %v608 = vsel %vm605, %v607, %v603
        %v609 = vmul.f32 1.0, %v608
        %v610 = vrcp.pop %v508
        %v611 = vmul.f32 %v508, %v610
        %v612 = vsub.f32 1.0, %v611
        %v613 = vmul.f32 %v610, %v612
        %v614 = vadd.f32 %v610, %v613
        %vm615 = vweird.f32 %v508
        %vm616 = vweird.f32 %v610
        %vm617 = vmor %vm615, %vm616
        %v618 = vsel %vm617, %v610, %v614
        %v619 = vand.u32 2147483647, %v508
        %vm620 = vcmp.eq.f32.partialorder %v619, 8.507059e+37
        %v621 = vand.u32 %v508, 2147483648
        %v622 = vor.u32 1.1754944e-38, %v621
        %v623 = vsel %vm620, %v622, %v618
        %v624 = vmul.f32 1.0, %v623
        %v625 = vrcp.pop %v509
        %v626 = vmul.f32 %v509, %v625
        %v627 = vsub.f32 1.0, %v626
        %v628 = vmul.f32 %v625, %v627
        %v629 = vadd.f32 %v625, %v628
        %vm630 = vweird.f32 %v509
        %vm631 = vweird.f32 %v625
        %vm632 = vmor %vm630, %vm631
        %v633 = vsel %vm632, %v625, %v629
        %v634 = vand.u32 2147483647, %v509
        %vm635 = vcmp.eq.f32.partialorder %v634, 8.507059e+37
        %v636 = vand.u32 %v509, 2147483648
        %v637 = vor.u32 1.1754944e-38, %v636
        %v638 = vsel %vm635, %v637, %v633
        %v639 = vmul.f32 1.0, %v638
        %v640 = vrcp.pop %v510
        %v641 = vmul.f32 %v510, %v640
        %v642 = vsub.f32 1.0, %v641
        %v643 = vmul.f32 %v640, %v642
        %v644 = vadd.f32 %v640, %v643
        %vm645 = vweird.f32 %v510
        %vm646 = vweird.f32 %v640
        %vm647 = vmor %vm645, %vm646
        %v648 = vsel %vm647, %v640, %v644
        %v649 = vand.u32 2147483647, %v510
        %vm650 = vcmp.eq.f32.partialorder %v649, 8.507059e+37
        %v651 = vand.u32 %v510, 2147483648
        %v652 = vor.u32 1.1754944e-38, %v651
        %v653 = vsel %vm650, %v652, %v648
        %v654 = vmul.f32 1.0, %v653
        %v655 = vrcp.pop %v511
        %v656 = vmul.f32 %v511, %v655
        %v657 = vsub.f32 1.0, %v656
        %v658 = vmul.f32 %v655, %v657
        %v659 = vadd.f32 %v655, %v658
        %vm660 = vweird.f32 %v511
        %vm661 = vweird.f32 %v655
        %vm662 = vmor %vm660, %vm661
        %v663 = vsel %vm662, %v655, %v659
        %v664 = vand.u32 2147483647, %v511
        %vm665 = vcmp.eq.f32.partialorder %v664, 8.507059e+37
        %v666 = vand.u32 %v511, 2147483648
        %v667 = vor.u32 1.1754944e-38, %v666
        %v668 = vsel %vm665, %v667, %v663
        %v669 = vmul.f32 1.0, %v668
        %v670 = vrcp.pop %v512
        %v671 = vmul.f32 %v512, %v670
        %v672 = vsub.f32 1.0, %v671
        %v673 = vmul.f32 %v670, %v672
        %v674 = vadd.f32 %v670, %v673
        %vm675 = vweird.f32 %v512
        %vm676 = vweird.f32 %v670
        %vm677 = vmor %vm675, %vm676
        %v678 = vsel %vm677, %v670, %v674
        %v679 = vand.u32 2147483647, %v512
        %vm680 = vcmp.eq.f32.partialorder %v679, 8.507059e+37
        %v681 = vand.u32 %v512, 2147483648
        %v682 = vor.u32 1.1754944e-38, %v681
        %v683 = vsel %vm680, %v682, %v678
        %v684 = vmul.f32 1.0, %v683
        %v685 = vrcp.pop %v513
        %v686 = vmul.f32 %v513, %v685
        %v687 = vsub.f32 1.0, %v686
        %v688 = vmul.f32 %v685, %v687
        %v689 = vadd.f32 %v685, %v688
        %vm690 = vweird.f32 %v513
        %vm691 = vweird.f32 %v685
        %vm692 = vmor %vm690, %vm691
        %v693 = vsel %vm692, %v685, %v689
        %v694 = vand.u32 2147483647, %v513
        %vm695 = vcmp.eq.f32.partialorder %v694, 8.507059e+37
        %v696 = vand.u32 %v513, 2147483648
        %v697 = vor.u32 1.1754944e-38, %v696
        %v698 = vsel %vm695, %v697, %v693
        %v699 = vmul.f32 1.0, %v698
        %v700 = vrcp.pop %v514
        %v701 = vmul.f32 %v514, %v700
        %v702 = vsub.f32 1.0, %v701
        %v703 = vmul.f32 %v700, %v702
        %v704 = vadd.f32 %v700, %v703
        %vm705 = vweird.f32 %v514
        %vm706 = vweird.f32 %v700
        %vm707 = vmor %vm705, %vm706
        %v708 = vsel %vm707, %v700, %v704
        %v709 = vand.u32 2147483647, %v514
        %vm710 = vcmp.eq.f32.partialorder %v709, 8.507059e+37
        %v711 = vand.u32 %v514, 2147483648
        %v712 = vor.u32 1.1754944e-38, %v711
        %v713 = vsel %vm710, %v712, %v708
        %v714 = vmul.f32 1.0, %v713
        %v715 = vrcp.pop %v515
        %v716 = vmul.f32 %v515, %v715
        %v717 = vsub.f32 1.0, %v716
        %v718 = vmul.f32 %v715, %v717
        %v719 = vadd.f32 %v715, %v718
        %vm720 = vweird.f32 %v515
        %vm721 = vweird.f32 %v715
        %vm722 = vmor %vm720, %vm721
        %v723 = vsel %vm722, %v715, %v719
        %v724 = vand.u32 2147483647, %v515
        %vm725 = vcmp.eq.f32.partialorder %v724, 8.507059e+37
        %v726 = vand.u32 %v515, 2147483648
        %v727 = vor.u32 1.1754944e-38, %v726
        %v728 = vsel %vm725, %v727, %v723
        %v729 = vmul.f32 1.0, %v728
        %v730 = vrcp.pop %v516
        %v731 = vmul.f32 %v516, %v730
        %v732 = vsub.f32 1.0, %v731
        %v733 = vmul.f32 %v730, %v732
        %v734 = vadd.f32 %v730, %v733
        %vm735 = vweird.f32 %v516
        %vm736 = vweird.f32 %v730
        %vm737 = vmor %vm735, %vm736
        %v738 = vsel %vm737, %v730, %v734
        %v739 = vand.u32 2147483647, %v516
        %vm740 = vcmp.eq.f32.partialorder %v739, 8.507059e+37
        %v741 = vand.u32 %v516, 2147483648
        %v742 = vor.u32 1.1754944e-38, %v741
        %v743 = vsel %vm740, %v742, %v738
        %v744 = vmul.f32 1.0, %v743
        %v745 = vrcp.pop %v517
        %v746 = vmul.f32 %v517, %v745
        %v747 = vsub.f32 1.0, %v746
        %v748 = vmul.f32 %v745, %v747
        %v749 = vadd.f32 %v745, %v748
        %vm750 = vweird.f32 %v517
        %vm751 = vweird.f32 %v745
        %vm752 = vmor %vm750, %vm751
        %v753 = vsel %vm752, %v745, %v749
        %v754 = vand.u32 2147483647, %v517
        %vm755 = vcmp.eq.f32.partialorder %v754, 8.507059e+37
        %v756 = vand.u32 %v517, 2147483648
        %v757 = vor.u32 1.1754944e-38, %v756
        %v758 = vsel %vm755, %v757, %v753
        %v759 = vmul.f32 1.0, %v758
        %v760 = vrcp.pop %v518
        %v761 = vmul.f32 %v518, %v760
        %v762 = vsub.f32 1.0, %v761
        %v763 = vmul.f32 %v760, %v762
        %v764 = vadd.f32 %v760, %v763
        %vm765 = vweird.f32 %v518
        %vm766 = vweird.f32 %v760
        %vm767 = vmor %vm765, %vm766
        %v768 = vsel %vm767, %v760, %v764
        %v769 = vand.u32 2147483647, %v518
        %vm770 = vcmp.eq.f32.partialorder %v769, 8.507059e+37
        %v771 = vand.u32 %v518, 2147483648
        %v772 = vor.u32 1.1754944e-38, %v771
        %v773 = vsel %vm770, %v772, %v768
        %v774 = vmul.f32 1.0, %v773
        %v775 = vrcp.pop %v519
        %v776 = vmul.f32 %v519, %v775
        %v777 = vsub.f32 1.0, %v776
        %v778 = vmul.f32 %v775, %v777
        %v779 = vadd.f32 %v775, %v778
        %vm780 = vweird.f32 %v519
        %vm781 = vweird.f32 %v775
        %vm782 = vmor %vm780, %vm781
        %v783 = vsel %vm782, %v775, %v779
        %v784 = vand.u32 2147483647, %v519
        %vm785 = vcmp.eq.f32.partialorder %v784, 8.507059e+37
        %v786 = vand.u32 %v519, 2147483648
        %v787 = vor.u32 1.1754944e-38, %v786
        %v788 = vsel %vm785, %v787, %v783
        %v789 = vmul.f32 1.0, %v788
        %v790 = vrcp.pop %v520
        %v791 = vmul.f32 %v520, %v790
        %v792 = vsub.f32 1.0, %v791
        %v793 = vmul.f32 %v790, %v792
        %v794 = vadd.f32 %v790, %v793
        %vm795 = vweird.f32 %v520
        %vm796 = vweird.f32 %v790
        %vm797 = vmor %vm795, %vm796
        %v798 = vsel %vm797, %v790, %v794
        %v799 = vand.u32 2147483647, %v520
        %vm800 = vcmp.eq.f32.partialorder %v799, 8.507059e+37
        %v801 = vand.u32 %v520, 2147483648
        %v802 = vor.u32 1.1754944e-38, %v801
        %v803 = vsel %vm800, %v802, %v798
        %v804 = vmul.f32 1.0, %v803
        %v805 = vrcp.pop %v521
        %v806 = vmul.f32 %v521, %v805
        %v807 = vsub.f32 1.0, %v806
        %v808 = vmul.f32 %v805, %v807
        %v809 = vadd.f32 %v805, %v808
        %vm810 = vweird.f32 %v521
        %vm811 = vweird.f32 %v805
        %vm812 = vmor %vm810, %vm811
        %v813 = vsel %vm812, %v805, %v809
        %v814 = vand.u32 2147483647, %v521
        %vm815 = vcmp.eq.f32.partialorder %v814, 8.507059e+37
        %v816 = vand.u32 %v521, 2147483648
        %v817 = vor.u32 1.1754944e-38, %v816
        %v818 = vsel %vm815, %v817, %v813
        %v819 = vmul.f32 1.0, %v818
        %v820 = vrcp.pop %v522
        %v821 = vmul.f32 %v522, %v820
        %v822 = vsub.f32 1.0, %v821
        %v823 = vmul.f32 %v820, %v822
        %v824 = vadd.f32 %v820, %v823
        %vm825 = vweird.f32 %v522
        %vm826 = vweird.f32 %v820
        %vm827 = vmor %vm825, %vm826
        %v828 = vsel %vm827, %v820, %v824
        %v829 = vand.u32 2147483647, %v522
        %vm830 = vcmp.eq.f32.partialorder %v829, 8.507059e+37
        %v831 = vand.u32 %v522, 2147483648
        %v832 = vor.u32 1.1754944e-38, %v831
        %v833 = vsel %vm830, %v832, %v828
        %v834 = vmul.f32 1.0, %v833
        %v835 = vrcp.pop %v523
        %v836 = vmul.f32 %v523, %v835
        %v837 = vsub.f32 1.0, %v836
        %v838 = vmul.f32 %v835, %v837
        %v839 = vadd.f32 %v835, %v838
        %vm840 = vweird.f32 %v523
        %vm841 = vweird.f32 %v835
        %vm842 = vmor %vm840, %vm841
        %v843 = vsel %vm842, %v835, %v839
        %v844 = vand.u32 2147483647, %v523
        %vm845 = vcmp.eq.f32.partialorder %v844, 8.507059e+37
        %v846 = vand.u32 %v523, 2147483648
        %v847 = vor.u32 1.1754944e-38, %v846
        %v848 = vsel %vm845, %v847, %v843
        %v849 = vmul.f32 1.0, %v848
        %v850 = vrcp.pop %v524
        %v851 = vmul.f32 %v524, %v850
        %v852 = vsub.f32 1.0, %v851
        %v853 = vmul.f32 %v850, %v852
        %v854 = vadd.f32 %v850, %v853
        %vm855 = vweird.f32 %v524
        %vm856 = vweird.f32 %v850
        %vm857 = vmor %vm855, %vm856
        %v858 = vsel %vm857, %v850, %v854
        %v859 = vand.u32 2147483647, %v524
        %vm860 = vcmp.eq.f32.partialorder %v859, 8.507059e+37
        %v861 = vand.u32 %v524, 2147483648
        %v862 = vor.u32 1.1754944e-38, %v861
        %v863 = vsel %vm860, %v862, %v858
        %v864 = vmul.f32 1.0, %v863
        %v865 = vrcp.pop %v525
        %v866 = vmul.f32 %v525, %v865
        %v867 = vsub.f32 1.0, %v866
        %v868 = vmul.f32 %v865, %v867
        %v869 = vadd.f32 %v865, %v868
        %vm870 = vweird.f32 %v525
        %vm871 = vweird.f32 %v865
        %vm872 = vmor %vm870, %vm871
        %v873 = vsel %vm872, %v865, %v869
        %v874 = vand.u32 2147483647, %v525
        %vm875 = vcmp.eq.f32.partialorder %v874, 8.507059e+37
        %v876 = vand.u32 %v525, 2147483648
        %v877 = vor.u32 1.1754944e-38, %v876
        %v878 = vsel %vm875, %v877, %v873
        %v879 = vmul.f32 1.0, %v878
        %v880 = vrcp.pop %v526
        %v881 = vmul.f32 %v526, %v880
        %v882 = vsub.f32 1.0, %v881
        %v883 = vmul.f32 %v880, %v882
        %v884 = vadd.f32 %v880, %v883
        %vm885 = vweird.f32 %v526
        %vm886 = vweird.f32 %v880
        %vm887 = vmor %vm885, %vm886
        %v888 = vsel %vm887, %v880, %v884
        %v889 = vand.u32 2147483647, %v526
        %vm890 = vcmp.eq.f32.partialorder %v889, 8.507059e+37
        %v891 = vand.u32 %v526, 2147483648
        %v892 = vor.u32 1.1754944e-38, %v891
        %v893 = vsel %vm890, %v892, %v888
        %v894 = vmul.f32 1.0, %v893
        %v895 = vrcp.pop %v527
        %v896 = vmul.f32 %v527, %v895
        %v897 = vsub.f32 1.0, %v896
        %v898 = vmul.f32 %v895, %v897
        %v899 = vadd.f32 %v895, %v898
        %vm900 = vweird.f32 %v527
        %vm901 = vweird.f32 %v895
        %vm902 = vmor %vm900, %vm901
        %v903 = vsel %vm902, %v895, %v899
        %v904 = vand.u32 2147483647, %v527
        %vm905 = vcmp.eq.f32.partialorder %v904, 8.507059e+37
        %v906 = vand.u32 %v527, 2147483648
        %v907 = vor.u32 1.1754944e-38, %v906
        %v908 = vsel %vm905, %v907, %v903
        %v909 = vmul.f32 1.0, %v908
        %v910 = vrcp.pop %v528
        %v911 = vmul.f32 %v528, %v910
        %v912 = vsub.f32 1.0, %v911
        %v913 = vmul.f32 %v910, %v912
        %v914 = vadd.f32 %v910, %v913
        %vm915 = vweird.f32 %v528
        %vm916 = vweird.f32 %v910
        %vm917 = vmor %vm915, %vm916
        %v918 = vsel %vm917, %v910, %v914
        %v919 = vand.u32 2147483647, %v528
        %vm920 = vcmp.eq.f32.partialorder %v919, 8.507059e+37
        %v921 = vand.u32 %v528, 2147483648
        %v922 = vor.u32 1.1754944e-38, %v921
        %v923 = vsel %vm920, %v922, %v918
        %v924 = vmul.f32 1.0, %v923
        %v925 = vrcp.pop %v529
        %v926 = vmul.f32 %v529, %v925
        %v927 = vsub.f32 1.0, %v926
        %v928 = vmul.f32 %v925, %v927
        %v929 = vadd.f32 %v925, %v928
        %vm930 = vweird.f32 %v529
        %vm931 = vweird.f32 %v925
        %vm932 = vmor %vm930, %vm931
        %v933 = vsel %vm932, %v925, %v929
        %v934 = vand.u32 2147483647, %v529
        %vm935 = vcmp.eq.f32.partialorder %v934, 8.507059e+37
        %v936 = vand.u32 %v529, 2147483648
        %v937 = vor.u32 1.1754944e-38, %v936
        %v938 = vsel %vm935, %v937, %v933
        %v939 = vmul.f32 1.0, %v938
        %v940 = vrcp.pop %v530
        %v941 = vmul.f32 %v530, %v940
        %v942 = vsub.f32 1.0, %v941
        %v943 = vmul.f32 %v940, %v942
        %v944 = vadd.f32 %v940, %v943
        %vm945 = vweird.f32 %v530
        %vm946 = vweird.f32 %v940
        %vm947 = vmor %vm945, %vm946
        %v948 = vsel %vm947, %v940, %v944
        %v949 = vand.u32 2147483647, %v530
        %vm950 = vcmp.eq.f32.partialorder %v949, 8.507059e+37
        %v951 = vand.u32 %v530, 2147483648
        %v952 = vor.u32 1.1754944e-38, %v951
        %v953 = vsel %vm950, %v952, %v948
        %v954 = vmul.f32 1.0, %v953
        %v955 = vrcp.pop %v531
        %v956 = vmul.f32 %v531, %v955
        %v957 = vsub.f32 1.0, %v956
        %v958 = vmul.f32 %v955, %v957
        %v959 = vadd.f32 %v955, %v958
        %vm960 = vweird.f32 %v531
        %vm961 = vweird.f32 %v955
        %vm962 = vmor %vm960, %vm961
        %v963 = vsel %vm962, %v955, %v959
        %v964 = vand.u32 2147483647, %v531
        %vm965 = vcmp.eq.f32.partialorder %v964, 8.507059e+37
        %v966 = vand.u32 %v531, 2147483648
        %v967 = vor.u32 1.1754944e-38, %v966
        %v968 = vsel %vm965, %v967, %v963
        %v969 = vmul.f32 1.0, %v968
        %v970 = vrcp.pop %v532
        %v971 = vmul.f32 %v532, %v970
        %v972 = vsub.f32 1.0, %v971
        %v973 = vmul.f32 %v970, %v972
        %v974 = vadd.f32 %v970, %v973
        %vm975 = vweird.f32 %v532
        %vm976 = vweird.f32 %v970
        %vm977 = vmor %vm975, %vm976
        %v978 = vsel %vm977, %v970, %v974
        %v979 = vand.u32 2147483647, %v532
        %vm980 = vcmp.eq.f32.partialorder %v979, 8.507059e+37
        %v981 = vand.u32 %v532, 2147483648
        %v982 = vor.u32 1.1754944e-38, %v981
        %v983 = vsel %vm980, %v982, %v978
        %v984 = vmul.f32 1.0, %v983
        %v985 = vrcp.pop %v533
        %v986 = vmul.f32 %v533, %v985
        %v987 = vsub.f32 1.0, %v986
        %v988 = vmul.f32 %v985, %v987
        %v989 = vadd.f32 %v985, %v988
        %vm990 = vweird.f32 %v533
        %vm991 = vweird.f32 %v985
        %vm992 = vmor %vm990, %vm991
        %v993 = vsel %vm992, %v985, %v989
        %v994 = vand.u32 2147483647, %v533
        %vm995 = vcmp.eq.f32.partialorder %v994, 8.507059e+37
        %v996 = vand.u32 %v533, 2147483648
        %v997 = vor.u32 1.1754944e-38, %v996
        %v998 = vsel %vm995, %v997, %v993
        %v999 = vmul.f32 1.0, %v998
        %v1000 = vrcp.pop %v534
        %v1001 = vmul.f32 %v534, %v1000
        %v1002 = vsub.f32 1.0, %v1001
        %v1003 = vmul.f32 %v1000, %v1002
        %v1004 = vadd.f32 %v1000, %v1003
        %vm1005 = vweird.f32 %v534
        %vm1006 = vweird.f32 %v1000
        %vm1007 = vmor %vm1005, %vm1006
        %v1008 = vsel %vm1007, %v1000, %v1004
        %v1009 = vand.u32 2147483647, %v534
        %vm1010 = vcmp.eq.f32.partialorder %v1009, 8.507059e+37
        %v1011 = vand.u32 %v534, 2147483648
        %v1012 = vor.u32 1.1754944e-38, %v1011
        %v1013 = vsel %vm1010, %v1012, %v1008
        %v1014 = vmul.f32 1.0, %v1013
        %v1015 = vmul.f32 %v549, 3.0
        %v1016 = vmul.f32 %v564, 3.0
        %v1017 = vmul.f32 %v579, 3.0
        %v1018 = vmul.f32 %v594, 3.0
        %v1019 = vmul.f32 %v609, 3.0
        %v1020 = vmul.f32 %v624, 3.0
        %v1021 = vmul.f32 %v639, 3.0
        %v1022 = vmul.f32 %v654, 3.0
        %v1023 = vmul.f32 %v669, 3.0
        %v1024 = vmul.f32 %v684, 3.0
        %v1025 = vmul.f32 %v699, 3.0
        %v1026 = vmul.f32 %v714, 3.0
        %v1027 = vmul.f32 %v729, 3.0
        %v1028 = vmul.f32 %v744, 3.0
        %v1029 = vmul.f32 %v759, 3.0
        %v1030 = vmul.f32 %v774, 3.0
        %v1031 = vmul.f32 %v789, 3.0
        %v1032 = vmul.f32 %v804, 3.0
        %v1033 = vmul.f32 %v819, 3.0
        %v1034 = vmul.f32 %v834, 3.0
        %v1035 = vmul.f32 %v849, 3.0
        %v1036 = vmul.f32 %v864, 3.0
        %v1037 = vmul.f32 %v879, 3.0
        %v1038 = vmul.f32 %v894, 3.0
        %v1039 = vmul.f32 %v909, 3.0
        %v1040 = vmul.f32 %v924, 3.0
        %v1041 = vmul.f32 %v939, 3.0
        %v1042 = vmul.f32 %v954, 3.0
        %v1043 = vmul.f32 %v969, 3.0
        %v1044 = vmul.f32 %v984, 3.0
        %v1045 = vmul.f32 %v999, 3.0
        %v1046 = vmul.f32 %v1014, 3.0
        %v1047 = vadd.f32 %v1015, -1.5
        %v1048 = vadd.f32 %v1016, -1.5
        %v1049 = vadd.f32 %v1017, -1.5
        %v1050 = vadd.f32 %v1018, -1.5
        %v1051 = vadd.f32 %v1019, -1.5
        %v1052 = vadd.f32 %v1020, -1.5
        %v1053 = vadd.f32 %v1021, -1.5
        %v1054 = vadd.f32 %v1022, -1.5
        %v1055 = vadd.f32 %v1023, -1.5
        %v1056 = vadd.f32 %v1024, -1.5
        %v1057 = vadd.f32 %v1025, -1.5
        %v1058 = vadd.f32 %v1026, -1.5
        %v1059 = vadd.f32 %v1027, -1.5
        %v1060 = vadd.f32 %v1028, -1.5
        %v1061 = vadd.f32 %v1029, -1.5
        %v1062 = vadd.f32 %v1030, -1.5
        %v1063 = vadd.f32 %v1031, -1.5
        %v1064 = vadd.f32 %v1032, -1.5
        %v1065 = vadd.f32 %v1033, -1.5
        %v1066 = vadd.f32 %v1034, -1.5
        %v1067 = vadd.f32 %v1035, -1.5
        %v1068 = vadd.f32 %v1036, -1.5
        %v1069 = vadd.f32 %v1037, -1.5
        %v1070 = vadd.f32 %v1038, -1.5
        %v1071 = vadd.f32 %v1039, -1.5
        %v1072 = vadd.f32 %v1040, -1.5
        %v1073 = vadd.f32 %v1041, -1.5
        %v1074 = vadd.f32 %v1042, -1.5
        %v1075 = vadd.f32 %v1043, -1.5
        %v1076 = vadd.f32 %v1044, -1.5
        %v1077 = vadd.f32 %v1045, -1.5
        %v1078 = vadd.f32 %v1046, -1.5
        %v1079 = vmax.f32 %v1047, 0.0
        %v1080 = vmax.f32 %v1048, 0.0
        %v1081 = vmax.f32 %v1049, 0.0
        %v1082 = vmax.f32 %v1050, 0.0
        %v1083 = vmax.f32 %v1051, 0.0
        %v1084 = vmax.f32 %v1052, 0.0
        %v1085 = vmax.f32 %v1053, 0.0
        %v1086 = vmax.f32 %v1054, 0.0
        %v1087 = vmax.f32 %v1055, 0.0
        %v1088 = vmax.f32 %v1056, 0.0
        %v1089 = vmax.f32 %v1057, 0.0
        %v1090 = vmax.f32 %v1058, 0.0
        %v1091 = vmax.f32 %v1059, 0.0
        %v1092 = vmax.f32 %v1060, 0.0
        %v1093 = vmax.f32 %v1061, 0.0
        %v1094 = vmax.f32 %v1062, 0.0
        %v1095 = vmax.f32 %v1063, 0.0
        %v1096 = vmax.f32 %v1064, 0.0
        %v1097 = vmax.f32 %v1065, 0.0
        %v1098 = vmax.f32 %v1066, 0.0
        %v1099 = vmax.f32 %v1067, 0.0
        %v1100 = vmax.f32 %v1068, 0.0
        %v1101 = vmax.f32 %v1069, 0.0
        %v1102 = vmax.f32 %v1070, 0.0
        %v1103 = vmax.f32 %v1071, 0.0
        %v1104 = vmax.f32 %v1072, 0.0
        %v1105 = vmax.f32 %v1073, 0.0
        %v1106 = vmax.f32 %v1074, 0.0
        %v1107 = vmax.f32 %v1075, 0.0
        %v1108 = vmax.f32 %v1076, 0.0
        %v1109 = vmax.f32 %v1077, 0.0
        %v1110 = vmax.f32 %v1078, 0.0
        %v1111 = vmin.f32 %v1079, 1.0
        %v1112 = vmin.f32 %v1080, 1.0
        %v1113 = vmin.f32 %v1081, 1.0
        %v1114 = vmin.f32 %v1082, 1.0
        %v1115 = vmin.f32 %v1083, 1.0
        %v1116 = vmin.f32 %v1084, 1.0
        %v1117 = vmin.f32 %v1085, 1.0
        %v1118 = vmin.f32 %v1086, 1.0
        %v1119 = vmin.f32 %v1087, 1.0
        %v1120 = vmin.f32 %v1088, 1.0
        %v1121 = vmin.f32 %v1089, 1.0
        %v1122 = vmin.f32 %v1090, 1.0
        %v1123 = vmin.f32 %v1091, 1.0
        %v1124 = vmin.f32 %v1092, 1.0
        %v1125 = vmin.f32 %v1093, 1.0
        %v1126 = vmin.f32 %v1094, 1.0
        %v1127 = vmin.f32 %v1095, 1.0
        %v1128 = vmin.f32 %v1096, 1.0
        %v1129 = vmin.f32 %v1097, 1.0
        %v1130 = vmin.f32 %v1098, 1.0
        %v1131 = vmin.f32 %v1099, 1.0
        %v1132 = vmin.f32 %v1100, 1.0
        %v1133 = vmin.f32 %v1101, 1.0
        %v1134 = vmin.f32 %v1102, 1.0
        %v1135 = vmin.f32 %v1103, 1.0
        %v1136 = vmin.f32 %v1104, 1.0
        %v1137 = vmin.f32 %v1105, 1.0
        %v1138 = vmin.f32 %v1106, 1.0
        %v1139 = vmin.f32 %v1107, 1.0
        %v1140 = vmin.f32 %v1108, 1.0
        %v1141 = vmin.f32 %v1109, 1.0
        %v1142 = vmin.f32 %v1110, 1.0
        %s1143 = sld [smem:[#allocation3]]
        %v1144 = vstv %s1143
        %v1145 = vmul.f32 %v1111, %v1144
        %v1146 = vmul.f32 %v1112, %v1144
        %v1147 = vmul.f32 %v1113, %v1144
        %v1148 = vmul.f32 %v1114, %v1144
        %v1149 = vmul.f32 %v1115, %v1144
        %v1150 = vmul.f32 %v1116, %v1144
        %v1151 = vmul.f32 %v1117, %v1144
        %v1152 = vmul.f32 %v1118, %v1144
        %v1153 = vmul.f32 %v1119, %v1144
        %v1154 = vmul.f32 %v1120, %v1144
        %v1155 = vmul.f32 %v1121, %v1144
        %v1156 = vmul.f32 %v1122, %v1144
        %v1157 = vmul.f32 %v1123, %v1144
        %v1158 = vmul.f32 %v1124, %v1144
        %v1159 = vmul.f32 %v1125, %v1144
        %v1160 = vmul.f32 %v1126, %v1144
        %v1161 = vmul.f32 %v1127, %v1144
        %v1162 = vmul.f32 %v1128, %v1144
        %v1163 = vmul.f32 %v1129, %v1144
        %v1164 = vmul.f32 %v1130, %v1144
        %v1165 = vmul.f32 %v1131, %v1144
        %v1166 = vmul.f32 %v1132, %v1144
        %v1167 = vmul.f32 %v1133, %v1144
        %v1168 = vmul.f32 %v1134, %v1144
        %v1169 = vmul.f32 %v1135, %v1144
        %v1170 = vmul.f32 %v1136, %v1144
        %v1171 = vmul.f32 %v1137, %v1144
        %v1172 = vmul.f32 %v1138, %v1144
        %v1173 = vmul.f32 %v1139, %v1144
        %v1174 = vmul.f32 %v1140, %v1144
        %v1175 = vmul.f32 %v1141, %v1144
        %v1176 = vmul.f32 %v1142, %v1144
        %v1177 = vsub.f32 %v343, %v311
        %v1178 = vsub.f32 %v344, %v312
        %v1179 = vsub.f32 %v345, %v313
        %v1180 = vsub.f32 %v346, %v314
        %v1181 = vsub.f32 %v347, %v315
        %v1182 = vsub.f32 %v348, %v316
        %v1183 = vsub.f32 %v349, %v317
        %v1184 = vsub.f32 %v350, %v318
        %v1185 = vsub.f32 %v351, %v319
        %v1186 = vsub.f32 %v352, %v320
        %v1187 = vsub.f32 %v353, %v321
        %v1188 = vsub.f32 %v354, %v322
        %v1189 = vsub.f32 %v355, %v323
        %v1190 = vsub.f32 %v356, %v324
        %v1191 = vsub.f32 %v357, %v325
        %v1192 = vsub.f32 %v358, %v326
        %v1193 = vsub.f32 %v359, %v327
        %v1194 = vsub.f32 %v360, %v328
        %v1195 = vsub.f32 %v361, %v329
        %v1196 = vsub.f32 %v362, %v330
        %v1197 = vsub.f32 %v363, %v331
        %v1198 = vsub.f32 %v364, %v332
        %v1199 = vsub.f32 %v365, %v333
        %v1200 = vsub.f32 %v366, %v334
        %v1201 = vsub.f32 %v367, %v335
        %v1202 = vsub.f32 %v368, %v336
        %v1203 = vsub.f32 %v369, %v337
        %v1204 = vsub.f32 %v370, %v338
        %v1205 = vsub.f32 %v371, %v339
        %v1206 = vsub.f32 %v372, %v340
        %v1207 = vsub.f32 %v373, %v341
        %v1208 = vsub.f32 %v374, %v342
        %v1209 = vmul.f32 %v1145, %v1177
        %v1210 = vmul.f32 %v1146, %v1178
        %v1211 = vmul.f32 %v1147, %v1179
        %v1212 = vmul.f32 %v1148, %v1180
        %v1213 = vmul.f32 %v1149, %v1181
        %v1214 = vmul.f32 %v1150, %v1182
        %v1215 = vmul.f32 %v1151, %v1183
        %v1216 = vmul.f32 %v1152, %v1184
        %v1217 = vmul.f32 %v1153, %v1185
        %v1218 = vmul.f32 %v1154, %v1186
        %v1219 = vmul.f32 %v1155, %v1187
        %v1220 = vmul.f32 %v1156, %v1188
        %v1221 = vmul.f32 %v1157, %v1189
        %v1222 = vmul.f32 %v1158, %v1190
        %v1223 = vmul.f32 %v1159, %v1191
        %v1224 = vmul.f32 %v1160, %v1192
        %v1225 = vmul.f32 %v1161, %v1193
        %v1226 = vmul.f32 %v1162, %v1194
        %v1227 = vmul.f32 %v1163, %v1195
        %v1228 = vmul.f32 %v1164, %v1196
        %v1229 = vmul.f32 %v1165, %v1197
        %v1230 = vmul.f32 %v1166, %v1198
        %v1231 = vmul.f32 %v1167, %v1199
        %v1232 = vmul.f32 %v1168, %v1200
        %v1233 = vmul.f32 %v1169, %v1201
        %v1234 = vmul.f32 %v1170, %v1202
        %v1235 = vmul.f32 %v1171, %v1203
        %v1236 = vmul.f32 %v1172, %v1204
        %v1237 = vmul.f32 %v1173, %v1205
        %v1238 = vmul.f32 %v1174, %v1206
        %v1239 = vmul.f32 %v1175, %v1207
        %v1240 = vmul.f32 %v1176, %v1208
        %v1241 = vadd.f32 %v311, %v1209
        %v1242 = vadd.f32 %v312, %v1210
        %v1243 = vadd.f32 %v313, %v1211
        %v1244 = vadd.f32 %v314, %v1212
        %v1245 = vadd.f32 %v315, %v1213
        %v1246 = vadd.f32 %v316, %v1214
        %v1247 = vadd.f32 %v317, %v1215
        %v1248 = vadd.f32 %v318, %v1216
        %v1249 = vadd.f32 %v319, %v1217
        %v1250 = vadd.f32 %v320, %v1218
        %v1251 = vadd.f32 %v321, %v1219
        %v1252 = vadd.f32 %v322, %v1220
        %v1253 = vadd.f32 %v323, %v1221
        %v1254 = vadd.f32 %v324, %v1222
        %v1255 = vadd.f32 %v325, %v1223
        %v1256 = vadd.f32 %v326, %v1224
        %v1257 = vadd.f32 %v327, %v1225
        %v1258 = vadd.f32 %v328, %v1226
        %v1259 = vadd.f32 %v329, %v1227
        %v1260 = vadd.f32 %v330, %v1228
        %v1261 = vadd.f32 %v331, %v1229
        %v1262 = vadd.f32 %v332, %v1230
        %v1263 = vadd.f32 %v333, %v1231
        %v1264 = vadd.f32 %v334, %v1232
        %v1265 = vadd.f32 %v335, %v1233
        %v1266 = vadd.f32 %v336, %v1234
        %v1267 = vadd.f32 %v337, %v1235
        %v1268 = vadd.f32 %v338, %v1236
        %v1269 = vadd.f32 %v339, %v1237
        %v1270 = vadd.f32 %v340, %v1238
        %v1271 = vadd.f32 %v341, %v1239
        %v1272 = vadd.f32 %v342, %v1240
        %1273 = vst [vmem:[%s302] sm:$0xff] %v1241
        %1274 = vst [vmem:[%s302 + $0x8] sm:$0xff] %v1242
        %1275 = vst [vmem:[%s302 + $0x10] sm:$0xff] %v1243
        %1276 = vst [vmem:[%s302 + $0x18] sm:$0xff] %v1244
        %1277 = vst [vmem:[%s302 + $0x20] sm:$0xff] %v1245
        %1278 = vst [vmem:[%s302 + $0x28] sm:$0xff] %v1246
        %1279 = vst [vmem:[%s302 + $0x30] sm:$0xff] %v1247
        %1280 = vst [vmem:[%s302 + $0x38] sm:$0xff] %v1248
        %1281 = vst [vmem:[%s302 + $0x40] sm:$0xff] %v1249
        %1282 = vst [vmem:[%s302 + $0x48] sm:$0xff] %v1250
        %1283 = vst [vmem:[%s302 + $0x50] sm:$0xff] %v1251
        %1284 = vst [vmem:[%s302 + $0x58] sm:$0xff] %v1252
        %1285 = vst [vmem:[%s302 + $0x60] sm:$0xff] %v1253
        %1286 = vst [vmem:[%s302 + $0x68] sm:$0xff] %v1254
        %1287 = vst [vmem:[%s302 + $0x70] sm:$0xff] %v1255
        %1288 = vst [vmem:[%s302 + $0x78] sm:$0xff] %v1256
        %1289 = vst [vmem:[%s302 + $0x80] sm:$0xff] %v1257
        %1290 = vst [vmem:[%s302 + $0x88] sm:$0xff] %v1258
        %1291 = vst [vmem:[%s302 + $0x90] sm:$0xff] %v1259
        %1292 = vst [vmem:[%s302 + $0x98] sm:$0xff] %v1260
        %1293 = vst [vmem:[%s302 + $0xa0] sm:$0xff] %v1261
        %1294 = vst [vmem:[%s302 + $0xa8] sm:$0xff] %v1262
        %1295 = vst [vmem:[%s302 + $0xb0] sm:$0xff] %v1263
        %1296 = vst [vmem:[%s302 + $0xb8] sm:$0xff] %v1264
        %1297 = vst [vmem:[%s302 + $0xc0] sm:$0xff] %v1265
        %1298 = vst [vmem:[%s302 + $0xc8] sm:$0xff] %v1266
        %1299 = vst [vmem:[%s302 + $0xd0] sm:$0xff] %v1267
        %1300 = vst [vmem:[%s302 + $0xd8] sm:$0xff] %v1268
        %1301 = vst [vmem:[%s302 + $0xe0] sm:$0xff] %v1269
        %1302 = vst [vmem:[%s302 + $0xe8] sm:$0xff] %v1270
        %1303 = vst [vmem:[%s302 + $0xf0] sm:$0xff] %v1271
        %1304 = vst [vmem:[%s302 + $0xf8] sm:$0xff] %v1272
        %s1305 = sand.u32 %s131, 1
        %s1306 = scalar_lea.sflag [#allocation6], %s1305
        %s1307 = sand.u32 %s131, 1
        %s1308 = smul.addr %s1307, 256
        %s1309 = scalar_lea.vmem [#allocation10], %s1308
        // Predicated region
        $region45: #{tpu_custom_call.1} parent=31 // pred_check
          %p1310 = pneg %p141
        $region46: #{tpu_custom_call.1} parent=31 // pred_check_branch
          %1312 = sbr.rel (%p1310) target = $region48
        $region47: #{tpu_custom_call.1} parent=31 // pred_region
          %s1313 = smul.u32 8, %s29
          %s1314 = smul.u32 4, %s30
          %1316 = vsyncadd %s1306, 0
          %s1317 = smul.addr %s1313, 4
          %s1318 = sadd.s32 %s1314, %s1317
          %s1319 = smul.addr %s1318, 8
          %s1320 = scalar_lea.hbm %s4, %s1319
          %s1321 = sshll.u32 %s1309, 4
          %s1322 = int_to_ptr.vmem [resolvable:$true] %s1321
          %s1323 = sshll.u32 %s1320, 4
          %s1324 = int_to_ptr.hbm [resolvable:$true] %s1323
          %1329 = dma.vmem_to_hbm [thread:$0]  %s1322, 4096, %s1324, %s1306, 512, 512, 32
        $region48: #{tpu_custom_call.1} parent=31 // pred_fallthru
          _
      $region32: #{tpu_custom_call.1} parent=5 // pred_fallthru
        _
      %p1330 = scmp.le.s32.totalorder 2, %s20
      // Predicated region
      $region49: #{tpu_custom_call.1} parent=5 // pred_check
        %p1331 = pneg %p1330
      $region50: #{tpu_custom_call.1} parent=5 // pred_check_branch
        %1333 = sbr.rel (%p1331) target = $region52
      $region51: #{tpu_custom_call.1} parent=5 // pred_region
        %s1334 = ssub.s32 %s20, 2
        // Predicated region
        $region53: #{tpu_custom_call.1} parent=51 // pred_check
          %p1335 = pneg %p147
        $region54: #{tpu_custom_call.1} parent=51 // pred_check_branch
          %1337 = sbr.rel (%p1335) target = $region56
        $region55: #{tpu_custom_call.1} parent=51 // pred_region
          %s1338 = sand.u32 %s132, 1
          %s1339 = scalar_lea.sflag [#allocation6], %s1338
          %s1340 = sand.u32 %s132, 1
          %s1341 = smul.addr %s1340, 256
          %s1342 = scalar_lea.vmem [#allocation10], %s1341
          %1344 = dma.done %s1339, 4096
        $region56: #{tpu_custom_call.1} parent=51 // pred_fallthru
          _
      $region52: #{tpu_custom_call.1} parent=5 // pred_fallthru
        _
    $region6: #{tpu_custom_call.1} parent=1 // loop_footer
      %s24 = sadd.s32 1, %s20
    $region7: #{tpu_custom_call.1} parent=1 // loop_footer_branch
      %19 = sbr.rel target = $region3
    $region8: #{tpu_custom_call.1} parent=1 // loop_exit
      _
    %1345 = vsyncpa [#allocation5], 1
    %s1346 = scalar_lea.sflag [#allocation5], 1
    %1347 = vsyncpa %s1346, 1
    %1348 = vsyncpa [#allocation8], 1
    %s1349 = scalar_lea.sflag [#allocation8], 1
    %1350 = vsyncpa %s1349, 1
    %1351 = vsyncpa [#allocation6], 1
    %s1352 = scalar_lea.sflag [#allocation6], 1
    %1353 = vsyncpa %s1352, 1

</llo_original>
